<compile_context>
chip_gen: v5e
topology: v5e:2x2
jax: 0.10.0
libtpu: 0.0.40
codegen_flags: <defaults>
</compile_context>

<pallas_src>
import jax
import jax.numpy as jnp
import numpy as np
from jax.experimental import pallas as pl
from jax.experimental.pallas import tpu as pltpu

IN_DIM = 3
HID = 32
OUT_DIM = 2
LANE = 128  # vreg lane width


def _cdiv(a, b):
    return (a + b - 1) // b


def _round_up(n, m):
    return _cdiv(n, m) * m


def _as_col(b):
    return b.reshape(-1, 1) if b.ndim == 1 else b


def _plan_tiles(B, max_block_b):
    """Pick (steps, block_b, B_pad): block_b a multiple of 128, steps * block_b >= B."""
    n_lane_tiles = _cdiv(B, LANE)                        # number of 128-wide lane groups
    steps = _cdiv(n_lane_tiles * LANE, max_block_b)      # fewest steps under the tile cap
    if n_lane_tiles >= 8:                                # B >= 1024: keep both v7x TCs busy
        steps = max(steps, 2)
    steps = max(1, min(steps, n_lane_tiles))
    block_b = _round_up(_cdiv(B, steps), LANE)
    return steps, block_b, steps * block_b


def _mlp_kernel(x_ref, w1_ref, b1_ref, w2_ref, b2_ref, w3_ref, b3_ref, o_ref):
    # Batch lives on the lane axis: x is [IN_DIM, block_b]; weights use torch layout
    # (out, in), so y^T = W @ x^T + b.  MXU layers accumulate in f32; bias/ReLU are f32.
    x = x_ref[...].astype(jnp.float32)                   # [3, block_b]
    w1 = w1_ref[...]                                     # [32, 3], f32

    # Layer 1: K=3 would use <3% of the MXU contraction dim -> do it on the idle VPU as
    # three broadcast-FMAs (w1 column lane-broadcast x row sublane-broadcast).
    h1 = (w1[:, 0:1] * x[0:1, :]
          + w1[:, 1:2] * x[1:2, :]
          + w1[:, 2:3] * x[2:3, :]) + b1_ref[...]
    h1 = jnp.maximum(h1, 0.0)                            # [32, block_b], f32

    # Layers 2 & 3 on the MXU (bf16 operands by default, f32 accumulation).
    h2 = jnp.dot(w2_ref[...], h1.astype(w2_ref.dtype),
                 preferred_element_type=jnp.float32) + b2_ref[...]
    h2 = jnp.maximum(h2, 0.0)
    y = jnp.dot(w3_ref[...], h2.astype(w3_ref.dtype),
                preferred_element_type=jnp.float32) + b3_ref[...]
    o_ref[...] = y.astype(o_ref.dtype)


def ann_forward_t(xt, params, *, max_block_b=8192,
                  compute_dtype=jnp.bfloat16, out_dtype=jnp.float32):
    """Feature-major fast path: xt [3, B] -> [2, B].

    No wrapper transposes; no pad pass when B is already a multiple of the chosen tile.
    Supply xt in bf16 from the producer to halve the dominant HBM read (the wrapper never
    re-casts x).  Weights use torch Linear layout: w (out, in), b (out,) or (out, 1).
    """
    assert xt.shape[0] == IN_DIM, f"expected [{IN_DIM}, B] input, got {xt.shape}"
    B = xt.shape[1]
    steps, block_b, B_pad = _plan_tiles(B, max_block_b)
    if B_pad != B:
        # Zero-padded tail columns are independent and sliced off below (benign).
        xt = jnp.pad(xt, ((0, 0), (0, B_pad - B)))

    # Tiny resident operands.  w1/biases stay f32 (VPU layer-1 + post-MXU adds are f32 on
    # every generation); only the MXU operands w2/w3 take the compute dtype.
    w1 = params["w1"].astype(jnp.float32)
    b1 = _as_col(params["b1"]).astype(jnp.float32)
    w2 = params["w2"].astype(compute_dtype)
    b2 = _as_col(params["b2"]).astype(jnp.float32)
    w3 = params["w3"].astype(compute_dtype)
    b3 = _as_col(params["b3"]).astype(jnp.float32)

    resident = lambda shape: pl.BlockSpec(shape, lambda i: (0, 0))  # never re-DMA'd

    out_t = pl.pallas_call(
        _mlp_kernel,
        out_shape=jax.ShapeDtypeStruct((OUT_DIM, B_pad), out_dtype),
        grid_spec=pl.GridSpec(
            grid=(steps,),
            in_specs=[
                pl.BlockSpec((IN_DIM, block_b), lambda i: (0, i)),  # x^T batch tile
                resident((HID, IN_DIM)),      # w1
                resident((HID, 1)),           # b1
                resident((HID, HID)),         # w2
                resident((HID, 1)),           # b2
                resident((OUT_DIM, HID)),     # w3
                resident((OUT_DIM, 1)),       # b3
            ],
            out_specs=pl.BlockSpec((OUT_DIM, block_b), lambda i: (0, i)),
        ),
        compiler_params=pltpu.CompilerParams(
            # Batch tiles are independent -> shard across v7x's two TensorCores.
            # VMEM at block_b=8192 is only a few MB, well under every generation's
            # scoped default (raise vmem_limit_bytes only if max_block_b is pushed >32K).
            dimension_semantics=("parallel",),
        ),
    )(xt, w1, b1, w2, b2, w3, b3)

    return out_t if B_pad == B else out_t[:, :B]


def ann_forward(x, params, **kwargs):
    """Torch-contract wrapper: x [B, 3] -> [B, 2].

    The two transposes here are the only wrapper-side HBM passes; latency/bandwidth
    sensitive callers should use `ann_forward_t` (feature-major) and keep batch last.
    """
    return jnp.transpose(ann_forward_t(jnp.transpose(x), params, **kwargs))


def init_params(key):
    """Deterministic init mimicking torch.nn.Linear's uniform(+/- 1/sqrt(fan_in)),
    stored in torch layout: w (out, in), b (out, 1)."""
    ks = jax.random.split(key, 6)

    def linear(kw, kb, fan_in, fan_out):
        bound = 1.0 / np.sqrt(fan_in)
        w = jax.random.uniform(kw, (fan_out, fan_in), jnp.float32, -bound, bound)
        b = jax.random.uniform(kb, (fan_out, 1), jnp.float32, -bound, bound)
        return w, b

    w1, b1 = linear(ks[0], ks[1], IN_DIM, HID)
    w2, b2 = linear(ks[2], ks[3], HID, HID)
    w3, b3 = linear(ks[4], ks[5], HID, OUT_DIM)
    return {"w1": w1, "b1": b1, "w2": w2, "b2": b2, "w3": w3, "b3": b3}


def ann_reference(x, p):
    h1 = jnp.maximum(x @ p["w1"].T + p["b1"].T, 0.0)
    h2 = jnp.maximum(h1 @ p["w2"].T + p["b2"].T, 0.0)
    return h2 @ p["w3"].T + p["b3"].T


if __name__ == "__main__":
    key = jax.random.PRNGKey(0)
    kx, kp = jax.random.split(key)
    params = init_params(kp)

    # Small shape consistent with the module: batch=16, in_features=3.
    B = 16
    x = jax.random.normal(kx, (B, IN_DIM), jnp.float32)
    ref = ann_reference(x, params)

    # Exact-dtype path: tight tolerance.
    out = jax.block_until_ready(ann_forward(x, params, compute_dtype=jnp.float32))
    np.testing.assert_allclose(np.asarray(out), np.asarray(ref), rtol=1e-5, atol=1e-5)

    # Default path (bf16 MXU operands, f32 accumulation): loose tolerance.
    out_bf16 = jax.block_until_ready(ann_forward(x, params))
    np.testing.assert_allclose(np.asarray(out_bf16), np.asarray(ref), rtol=2e-2, atol=2e-2)

    # Feature-major fast path (zero wrapper transposes) with a bf16 "producer" input.
    xt_bf16 = jnp.transpose(x).astype(jnp.bfloat16)
    out_t = jax.block_until_ready(ann_forward_t(xt_bf16, params))
    np.testing.assert_allclose(np.asarray(out_t).T, np.asarray(ref), rtol=2e-2, atol=2e-2)

    # Batch not a multiple of 128: exercises the pad-and-slice tail path.
    x_odd = jax.random.normal(kx, (19, IN_DIM), jnp.float32)
    out_odd = jax.block_until_ready(ann_forward(x_odd, params, compute_dtype=jnp.float32))
    np.testing.assert_allclose(np.asarray(out_odd),
                               np.asarray(ann_reference(x_odd, params)),
                               rtol=1e-5, atol=1e-5)

    # Batch large enough to trigger a multi-step ("parallel") grid: 1536 -> 2 x 768 tiles.
    x_big = jax.random.normal(kx, (1536, IN_DIM), jnp.float32)
    out_big = jax.block_until_ready(ann_forward(x_big, params, compute_dtype=jnp.float32))
    np.testing.assert_allclose(np.asarray(out_big),
                               np.asarray(ann_reference(x_big, params)),
                               rtol=1e-5, atol=1e-5)

    print("KERNEL_OK")
</pallas_src>

<mosaic_0001>
module attributes {stable_mosaic.version = 11 : i64} {
  func.func @_mlp_kernel(%arg0: i32, %arg1: memref<3x128xf32, #tpu.memory_space<vmem>>, %arg2: memref<32x3xf32, #tpu.memory_space<vmem>>, %arg3: memref<32x1xf32, #tpu.memory_space<vmem>>, %arg4: memref<32x32xf32, #tpu.memory_space<vmem>>, %arg5: memref<32x1xf32, #tpu.memory_space<vmem>>, %arg6: memref<2x32xf32, #tpu.memory_space<vmem>>, %arg7: memref<2x1xf32, #tpu.memory_space<vmem>>, %arg8: memref<2x128xf32, #tpu.memory_space<vmem>>) attributes {dimension_semantics = [#tpu.dimension_semantics<parallel>], iteration_bounds = array<i64: 1>, scalar_prefetch = 0 : i64, scratch_operands = 0 : i64, tpu.core_type = #tpu.core_type<tc>, window_params = [{transform_indices = @transform_0, window_bounds = array<i64: 3, 128>}, {pipeline_mode = #tpu.pipeline_mode<synchronous>, transform_indices = @transform_1, window_bounds = array<i64: 32, 3>}, {pipeline_mode = #tpu.pipeline_mode<synchronous>, transform_indices = @transform_2, window_bounds = array<i64: 32, 1>}, {pipeline_mode = #tpu.pipeline_mode<synchronous>, transform_indices = @transform_3, window_bounds = array<i64: 32, 32>}, {pipeline_mode = #tpu.pipeline_mode<synchronous>, transform_indices = @transform_4, window_bounds = array<i64: 32, 1>}, {pipeline_mode = #tpu.pipeline_mode<synchronous>, transform_indices = @transform_5, window_bounds = array<i64: 2, 32>}, {pipeline_mode = #tpu.pipeline_mode<synchronous>, transform_indices = @transform_6, window_bounds = array<i64: 2, 1>}, {transform_indices = @transform_7, window_bounds = array<i64: 2, 128>}]} {
    %c0 = arith.constant 0 : index
    %c0_0 = arith.constant 0 : index
    %0 = vector.load %arg1[%c0, %c0_0] : memref<3x128xf32, #tpu.memory_space<vmem>>, vector<3x128xf32>
    %c0_1 = arith.constant 0 : index
    %c0_2 = arith.constant 0 : index
    %1 = vector.load %arg2[%c0_1, %c0_2] : memref<32x3xf32, #tpu.memory_space<vmem>>, vector<32x3xf32>
    %2 = vector.extract_strided_slice %1 {offsets = [0, 0], sizes = [32, 1], strides = [1, 1]} : vector<32x3xf32> to vector<32x1xf32>
    %3 = vector.extract_strided_slice %0 {offsets = [0, 0], sizes = [1, 128], strides = [1, 1]} : vector<3x128xf32> to vector<1x128xf32>
    %4 = vector.broadcast %2 : vector<32x1xf32> to vector<32x128xf32>
    %5 = vector.broadcast %3 : vector<1x128xf32> to vector<32x128xf32>
    %6 = arith.mulf %4, %5 : vector<32x128xf32>
    %7 = vector.extract_strided_slice %1 {offsets = [0, 1], sizes = [32, 1], strides = [1, 1]} : vector<32x3xf32> to vector<32x1xf32>
    %8 = vector.extract_strided_slice %0 {offsets = [1, 0], sizes = [1, 128], strides = [1, 1]} : vector<3x128xf32> to vector<1x128xf32>
    %9 = vector.broadcast %7 : vector<32x1xf32> to vector<32x128xf32>
    %10 = vector.broadcast %8 : vector<1x128xf32> to vector<32x128xf32>
    %11 = arith.mulf %9, %10 : vector<32x128xf32>
    %12 = arith.addf %6, %11 : vector<32x128xf32>
    %13 = vector.extract_strided_slice %1 {offsets = [0, 2], sizes = [32, 1], strides = [1, 1]} : vector<32x3xf32> to vector<32x1xf32>
    %14 = vector.extract_strided_slice %0 {offsets = [2, 0], sizes = [1, 128], strides = [1, 1]} : vector<3x128xf32> to vector<1x128xf32>
    %15 = vector.broadcast %13 : vector<32x1xf32> to vector<32x128xf32>
    %16 = vector.broadcast %14 : vector<1x128xf32> to vector<32x128xf32>
    %17 = arith.mulf %15, %16 : vector<32x128xf32>
    %18 = arith.addf %12, %17 : vector<32x128xf32>
    %c0_3 = arith.constant 0 : index
    %c0_4 = arith.constant 0 : index
    %19 = vector.load %arg3[%c0_3, %c0_4] : memref<32x1xf32, #tpu.memory_space<vmem>>, vector<32x1xf32>
    %20 = vector.broadcast %19 : vector<32x1xf32> to vector<32x128xf32>
    %21 = arith.addf %18, %20 : vector<32x128xf32>
    %cst = arith.constant 0.000000e+00 : f32
    %22 = vector.broadcast %cst : f32 to vector<32x128xf32>
    %23 = arith.maximumf %21, %22 : vector<32x128xf32>
    %c0_5 = arith.constant 0 : index
    %c0_6 = arith.constant 0 : index
    %24 = vector.load %arg4[%c0_5, %c0_6] : memref<32x32xf32, #tpu.memory_space<vmem>>, vector<32x32xf32>
    %cst_7 = arith.constant dense<0.000000e+00> : vector<32x128xf32>
    %25 = tpu.matmul %24, %23, %cst_7 {dimension_numbers = #tpu.dot_dimension_numbers<[1], [0], [0], [1], [0, 0, 1, 1], [], []>} : vector<32x32xf32>, vector<32x128xf32>, vector<32x128xf32> -> vector<32x128xf32>
    %c0_8 = arith.constant 0 : index
    %c0_9 = arith.constant 0 : index
    %26 = vector.load %arg5[%c0_8, %c0_9] : memref<32x1xf32, #tpu.memory_space<vmem>>, vector<32x1xf32>
    %27 = vector.broadcast %26 : vector<32x1xf32> to vector<32x128xf32>
    %28 = arith.addf %25, %27 : vector<32x128xf32>
    %cst_10 = arith.constant 0.000000e+00 : f32
    %29 = vector.broadcast %cst_10 : f32 to vector<32x128xf32>
    %30 = arith.maximumf %28, %29 : vector<32x128xf32>
    %c0_11 = arith.constant 0 : index
    %c0_12 = arith.constant 0 : index
    %31 = vector.load %arg6[%c0_11, %c0_12] : memref<2x32xf32, #tpu.memory_space<vmem>>, vector<2x32xf32>
    %cst_13 = arith.constant dense<0.000000e+00> : vector<2x128xf32>
    %32 = tpu.matmul %31, %30, %cst_13 {dimension_numbers = #tpu.dot_dimension_numbers<[1], [0], [0], [1], [0, 0, 1, 1], [], []>} : vector<2x32xf32>, vector<32x128xf32>, vector<2x128xf32> -> vector<2x128xf32>
    %c0_14 = arith.constant 0 : index
    %c0_15 = arith.constant 0 : index
    %33 = vector.load %arg7[%c0_14, %c0_15] : memref<2x1xf32, #tpu.memory_space<vmem>>, vector<2x1xf32>
    %34 = vector.broadcast %33 : vector<2x1xf32> to vector<2x128xf32>
    %35 = arith.addf %32, %34 : vector<2x128xf32>
    %c0_16 = arith.constant 0 : index
    %c0_17 = arith.constant 0 : index
    %36 = vector.load %arg8[%c0_16, %c0_17] : memref<2x128xf32, #tpu.memory_space<vmem>>, vector<2x128xf32>
    tpu.vector_store %arg8[%c0_16, %c0_17], %35 {strides = array<i32>} : memref<2x128xf32, #tpu.memory_space<vmem>>, vector<2x128xf32>,
    return
  }
  func.func @transform_0(%arg0: i32) -> (i32, i32) {
    %c0_i32 = arith.constant 0 : i32
    %c0_i32_0 = arith.constant 0 : i32
    return %c0_i32, %arg0 : i32, i32
  }
  func.func @transform_1(%arg0: i32) -> (i32, i32) {
    %c0_i32 = arith.constant 0 : i32
    %c0_i32_0 = arith.constant 0 : i32
    %c0_i32_1 = arith.constant 0 : i32
    return %c0_i32, %c0_i32_0 : i32, i32
  }
  func.func @transform_2(%arg0: i32) -> (i32, i32) {
    %c0_i32 = arith.constant 0 : i32
    %c0_i32_0 = arith.constant 0 : i32
    %c0_i32_1 = arith.constant 0 : i32
    return %c0_i32, %c0_i32_0 : i32, i32
  }
  func.func @transform_3(%arg0: i32) -> (i32, i32) {
    %c0_i32 = arith.constant 0 : i32
    %c0_i32_0 = arith.constant 0 : i32
    %c0_i32_1 = arith.constant 0 : i32
    return %c0_i32, %c0_i32_0 : i32, i32
  }
  func.func @transform_4(%arg0: i32) -> (i32, i32) {
    %c0_i32 = arith.constant 0 : i32
    %c0_i32_0 = arith.constant 0 : i32
    %c0_i32_1 = arith.constant 0 : i32
    return %c0_i32, %c0_i32_0 : i32, i32
  }
  func.func @transform_5(%arg0: i32) -> (i32, i32) {
    %c0_i32 = arith.constant 0 : i32
    %c0_i32_0 = arith.constant 0 : i32
    %c0_i32_1 = arith.constant 0 : i32
    return %c0_i32, %c0_i32_0 : i32, i32
  }
  func.func @transform_6(%arg0: i32) -> (i32, i32) {
    %c0_i32 = arith.constant 0 : i32
    %c0_i32_0 = arith.constant 0 : i32
    %c0_i32_1 = arith.constant 0 : i32
    return %c0_i32, %c0_i32_0 : i32, i32
  }
  func.func @transform_7(%arg0: i32) -> (i32, i32) {
    %c0_i32 = arith.constant 0 : i32
    %c0_i32_0 = arith.constant 0 : i32
    return %c0_i32, %arg0 : i32, i32
  }
}

</mosaic_0001>

<llo_original>
// kernel: tpu_custom_call.1
$region0: #{tpu_custom_call.1}
  #allocation0 [shape = 'u32[]', space=smem, size = 0x4, offset = 0x4, fixed_abs, tag = 'smem constant byte address 0x4 - core index']
  #allocation1 [shape = 'u32[72,128]{1,0:T(1,128)}', space=vmem, size = 0x9000, scoped, tag = 'internal scratch']
  %s0 = inlined_call_operand.vmem [shape: f32[3,128], index: 0, kind: input, shape index: {}]
  %s1 = inlined_call_operand.vmem [shape: f32[32,3], index: 1, kind: input, shape index: {}]
  %s2 = inlined_call_operand.vmem [shape: f32[32,1], index: 2, kind: input, shape index: {}]
  %s3 = inlined_call_operand.vmem [shape: f32[32,32], index: 3, kind: input, shape index: {}]
  %s4 = inlined_call_operand.vmem [shape: f32[32,1], index: 4, kind: input, shape index: {}]
  %s5 = inlined_call_operand.vmem [shape: f32[2,32], index: 5, kind: input, shape index: {}]
  %s6 = inlined_call_operand.vmem [shape: f32[2,1], index: 6, kind: input, shape index: {}]
  %s7 = inlined_call_operand.hbm [shape: f32[2,128], index: 7, kind: output, shape index: {}]
  %s8 = sld [smem:[#allocation0]]
  $region38: #{tpu_custom_call.1} parent=0
    _
  %s10 = ssub.s32 1, %s8
  %s11 = scalar_select 0, %s10, %s8
  $region1: #{tpu_custom_call.1} parent=0
    #allocation2 [shape = 'u8[1024]{0}', space=vmem, size = 0x400, scoped, tag = 'output window, operand 0, single buffered']
    #allocation3 [shape = 's32[1]{0}', space=sflag, size = 0x4, scoped, tag = 'scoped memory for tpu_custom_call.1']
    %12 = vsyncpa [#allocation3], 0
    // Predicated region
    $region2: #{tpu_custom_call.1} parent=1 // pred_check
      _
    $region3: #{tpu_custom_call.1} parent=1 // pred_check_branch
      %14 = sbr.rel (0) target = $region5
    $region4: #{tpu_custom_call.1} parent=1 // pred_region
      _
    $region5: #{tpu_custom_call.1} parent=1 // pred_fallthru
      _
    // Predicated region
    $region6: #{tpu_custom_call.1} parent=1 // pred_check
      _
    $region7: #{tpu_custom_call.1} parent=1 // pred_check_branch
      %16 = sbr.rel (0) target = $region9
    $region8: #{tpu_custom_call.1} parent=1 // pred_region
      _
    $region9: #{tpu_custom_call.1} parent=1 // pred_fallthru
      _
    // Predicated region
    $region10: #{tpu_custom_call.1} parent=1 // pred_check
      _
    $region11: #{tpu_custom_call.1} parent=1 // pred_check_branch
      %18 = sbr.rel (0) target = $region13
    $region12: #{tpu_custom_call.1} parent=1 // pred_region
      _
    $region13: #{tpu_custom_call.1} parent=1 // pred_fallthru
      _
    // Predicated region
    $region14: #{tpu_custom_call.1} parent=1 // pred_check
      _
    $region15: #{tpu_custom_call.1} parent=1 // pred_check_branch
      %20 = sbr.rel (0) target = $region17
    $region16: #{tpu_custom_call.1} parent=1 // pred_region
      _
    $region17: #{tpu_custom_call.1} parent=1 // pred_fallthru
      _
    // Predicated region
    $region18: #{tpu_custom_call.1} parent=1 // pred_check
      _
    $region19: #{tpu_custom_call.1} parent=1 // pred_check_branch
      %22 = sbr.rel (0) target = $region21
    $region20: #{tpu_custom_call.1} parent=1 // pred_region
      _
    $region21: #{tpu_custom_call.1} parent=1 // pred_fallthru
      _
    // Predicated region
    $region22: #{tpu_custom_call.1} parent=1 // pred_check
      _
    $region23: #{tpu_custom_call.1} parent=1 // pred_check_branch
      %24 = sbr.rel (0) target = $region25
    $region24: #{tpu_custom_call.1} parent=1 // pred_region
      _
    $region25: #{tpu_custom_call.1} parent=1 // pred_fallthru
      _
    // Predicated region
    $region26: #{tpu_custom_call.1} parent=1 // pred_check
      _
    $region27: #{tpu_custom_call.1} parent=1 // pred_check_branch
      %26 = sbr.rel (0) target = $region29
    $region28: #{tpu_custom_call.1} parent=1 // pred_region
      _
    $region29: #{tpu_custom_call.1} parent=1 // pred_fallthru
      _
    %v27 = vld [vmem:[%s0] sm:$0x7]
    %v28 = vld [vmem:[%s1] sm:$0xff]
    %v29 = vld [vmem:[%s1 + $0x8] sm:$0xff]
    %v30 = vld [vmem:[%s1 + $0x10] sm:$0xff]
    %v31 = vld [vmem:[%s1 + $0x18] sm:$0xff]
    %33 = vset.pattern.permute.xlu0 0
    %34 = vperm.xlu0 %33, %v28
    %v35 = vpop.permute.xlu0 %34
    %38 = vset.pattern.permute.xlu0 0
    %39 = vperm.xlu0 %38, %v29
    %v40 = vpop.permute.xlu0 %39
    %43 = vset.pattern.permute.xlu0 0
    %44 = vperm.xlu0 %43, %v30
    %v45 = vpop.permute.xlu0 %44
    %48 = vset.pattern.permute.xlu0 0
    %49 = vperm.xlu0 %48, %v31
    %v50 = vpop.permute.xlu0 %49
    %v52 = vperm.slane %v27, 0
    %v53 = vmul.f32 %v35, %v52
    %v54 = vmul.f32 %v40, %v52
    %v55 = vmul.f32 %v45, %v52
    %v56 = vmul.f32 %v50, %v52
    %57 = vset.pattern.permute.xlu0 1
    %58 = vperm.xlu0 %57, %v28
    %v59 = vpop.permute.xlu0 %58
    %61 = vset.pattern.permute.xlu0 1
    %62 = vperm.xlu0 %61, %v29
    %v63 = vpop.permute.xlu0 %62
    %65 = vset.pattern.permute.xlu0 1
    %66 = vperm.xlu0 %65, %v30
    %v67 = vpop.permute.xlu0 %66
    %69 = vset.pattern.permute.xlu0 1
    %70 = vperm.xlu0 %69, %v31
    %v71 = vpop.permute.xlu0 %70
    %v73 = vperm.slane %v27, 1
    %v74 = vmul.f32 %v59, %v73
    %v75 = vmul.f32 %v63, %v73
    %v76 = vmul.f32 %v67, %v73
    %v77 = vmul.f32 %v71, %v73
    %v78 = vadd.f32 %v53, %v74
    %v79 = vadd.f32 %v54, %v75
    %v80 = vadd.f32 %v55, %v76
    %v81 = vadd.f32 %v56, %v77
    %82 = vset.pattern.permute.xlu0 2
    %83 = vperm.xlu0 %82, %v28
    %v84 = vpop.permute.xlu0 %83
    %86 = vset.pattern.permute.xlu0 2
    %87 = vperm.xlu0 %86, %v29
    %v88 = vpop.permute.xlu0 %87
    %90 = vset.pattern.permute.xlu0 2
    %91 = vperm.xlu0 %90, %v30
    %v92 = vpop.permute.xlu0 %91
    %94 = vset.pattern.permute.xlu0 2
    %95 = vperm.xlu0 %94, %v31
    %v96 = vpop.permute.xlu0 %95
    %v98 = vperm.slane %v27, 2
    %v99 = vmul.f32 %v84, %v98
    %v100 = vmul.f32 %v88, %v98
    %v101 = vmul.f32 %v92, %v98
    %v102 = vmul.f32 %v96, %v98
    %v103 = vadd.f32 %v78, %v99
    %v104 = vadd.f32 %v79, %v100
    %v105 = vadd.f32 %v80, %v101
    %v106 = vadd.f32 %v81, %v102
    %v107 = vld [vmem:[%s2] sm:$0xff]
    %v108 = vld [vmem:[%s2 + $0x8] sm:$0xff]
    %v109 = vld [vmem:[%s2 + $0x10] sm:$0xff]
    %v110 = vld [vmem:[%s2 + $0x18] sm:$0xff]
    %112 = vset.pattern.permute.xlu0 0
    %113 = vperm.xlu0 %112, %v107
    %v114 = vpop.permute.xlu0 %113
    %117 = vset.pattern.permute.xlu0 0
    %118 = vperm.xlu0 %117, %v108
    %v119 = vpop.permute.xlu0 %118
    %122 = vset.pattern.permute.xlu0 0
    %123 = vperm.xlu0 %122, %v109
    %v124 = vpop.permute.xlu0 %123
    %127 = vset.pattern.permute.xlu0 0
    %128 = vperm.xlu0 %127, %v110
    %v129 = vpop.permute.xlu0 %128
    %v131 = vadd.f32 %v103, %v114
    %v132 = vadd.f32 %v104, %v119
    %v133 = vadd.f32 %v105, %v124
    %v134 = vadd.f32 %v106, %v129
    %v135 = vmax.f32 %v131, 0.0
    %v136 = vmax.f32 %v132, 0.0
    %v137 = vmax.f32 %v133, 0.0
    %v138 = vmax.f32 %v134, 0.0
    %v139 = vld [vmem:[%s3] sm:$0xff]
    %v140 = vld [vmem:[%s3 + $0x8] sm:$0xff]
    %v141 = vld [vmem:[%s3 + $0x10] sm:$0xff]
    %v142 = vld [vmem:[%s3 + $0x18] sm:$0xff]
    %v143 = vld [vmem:[%s4] sm:$0xff]
    %v144 = vld [vmem:[%s4 + $0x8] sm:$0xff]
    %v145 = vld [vmem:[%s4 + $0x10] sm:$0xff]
    %v146 = vld [vmem:[%s4 + $0x18] sm:$0xff]
    %148 = vset.pattern.permute.xlu0 0
    %149 = vperm.xlu0 %148, %v143
    %v150 = vpop.permute.xlu0 %149
    %153 = vset.pattern.permute.xlu0 0
    %154 = vperm.xlu0 %153, %v144
    %v155 = vpop.permute.xlu0 %154
    %158 = vset.pattern.permute.xlu0 0
    %159 = vperm.xlu0 %158, %v145
    %v160 = vpop.permute.xlu0 %159
    %163 = vset.pattern.permute.xlu0 0
    %164 = vperm.xlu0 %163, %v146
    %v165 = vpop.permute.xlu0 %164
    %vm167 = vcmask 261120
    %v169 = vsel %vm167, %v139, 0
    %v172 = vsel %vm167, %v140, 0
    %v175 = vsel %vm167, %v141, 0
    %v178 = vsel %vm167, %v142, 0
    %180 = vmatpush.msra.mxu0 0.0
    %181 = vmatpush.msra.mxu0 0.0
    %182 = vmatpush.msra.mxu0 0.0
    %183 = vmatpush.msra.mxu0 0.0
    %184 = vmatpush.msra.mxu0 0.0
    %185 = vmatpush.msra.mxu0 0.0
    %186 = vmatpush.msra.mxu0 0.0
    %187 = vmatpush.msra.mxu0 0.0
    %188 = vmatpush.msra.mxu0 0.0
    %189 = vmatpush.msra.mxu0 0.0
    %190 = vmatpush.msra.mxu0 0.0
    %191 = vmatpush.msra.mxu0 0.0
    %192 = vmatpush.msra.mxu0 %v138
    %193 = vmatpush.msra.mxu0 %v137
    %194 = vmatpush.msra.mxu0 %v136
    %195 = vmatpush.msra.mxu0 %v135
    %196 = vmatmul.f32.gmra.mxu0 %v169
    %v197 = vpop.f32.mrf.mxu0
    %v198 = vadd.f32 %v150, %v197
    %199 = vmatmul.f32.gmra.mxu0 %v172
    %v200 = vpop.f32.mrf.mxu0
    %v201 = vadd.f32 %v155, %v200
    %202 = vmatmul.f32.gmra.mxu0 %v175
    %v203 = vpop.f32.mrf.mxu0
    %v204 = vadd.f32 %v160, %v203
    %205 = vmatmul.f32.gmra.mxu0 %v178
    %v206 = vpop.f32.mrf.mxu0
    %v207 = vadd.f32 %v165, %v206
    %208 = vdwg.mxu0
    %v209 = vmax.f32 %v198, 0.0
    %v210 = vmax.f32 %v201, 0.0
    %v211 = vmax.f32 %v204, 0.0
    %v212 = vmax.f32 %v207, 0.0
    %v213 = vld [vmem:[%s5] sm:$0x3]
    %v214 = vld [vmem:[%s6] sm:$0x3]
    %216 = vset.pattern.permute.xlu0 0
    %217 = vperm.xlu0 %216, %v214
    %v218 = vpop.permute.xlu0 %217
    %v221 = vsel %vm167, %v213, 0
    %223 = vmatpush.msra.mxu0 0.0
    %224 = vmatpush.msra.mxu0 0.0
    %225 = vmatpush.msra.mxu0 0.0
    %226 = vmatpush.msra.mxu0 0.0
    %227 = vmatpush.msra.mxu0 0.0
    %228 = vmatpush.msra.mxu0 0.0
    %229 = vmatpush.msra.mxu0 0.0
    %230 = vmatpush.msra.mxu0 0.0
    %231 = vmatpush.msra.mxu0 0.0
    %232 = vmatpush.msra.mxu0 0.0
    %233 = vmatpush.msra.mxu0 0.0
    %234 = vmatpush.msra.mxu0 0.0
    %235 = vmatpush.msra.mxu0 %v212
    %236 = vmatpush.msra.mxu0 %v211
    %237 = vmatpush.msra.mxu0 %v210
    %238 = vmatpush.msra.mxu0 %v209
    %239 = vmatmul.f32.gmra.mxu0 %v221
    %v240 = vpop.f32.mrf.mxu0
    %v241 = vadd.f32 %v218, %v240
    %242 = vdwg.mxu0
    %243 = vst [vmem:[#allocation2] sm:$0x3] %v241
    // Predicated region
    $region30: #{tpu_custom_call.1} parent=1 // pred_check
      _
    $region31: #{tpu_custom_call.1} parent=1 // pred_check_branch
      %245 = sbr.rel (0) target = $region33
    $region32: #{tpu_custom_call.1} parent=1 // pred_region
      %247 = vsyncadd [#allocation3], 0
      %s249 = sshll.u32 [#allocation2], 4
      %s250 = int_to_ptr.vmem [resolvable:$true] %s249
      %s251 = sshll.u32 %s7, 4
      %s252 = int_to_ptr.hbm [resolvable:$true] %s251
      %254 = dma.vmem_to_hbm [thread:$0]  %s250, 32, %s252, [#allocation3]
    $region33: #{tpu_custom_call.1} parent=1 // pred_fallthru
      _
    // Predicated region
    $region34: #{tpu_custom_call.1} parent=1 // pred_check
      _
    $region35: #{tpu_custom_call.1} parent=1 // pred_check_branch
      %256 = sbr.rel (0) target = $region37
    $region36: #{tpu_custom_call.1} parent=1 // pred_region
      %258 = dma.done [#allocation3], 32
    $region37: #{tpu_custom_call.1} parent=1 // pred_fallthru
      _
    %259 = vsyncpa [#allocation3], 1

</llo_original>
